<compile_context>
chip_gen: v5e
topology: v5e:2x2
jax: 0.10.0
libtpu: 0.0.40
codegen_flags: <defaults>
</compile_context>

<pallas_src>
import functools

import jax
import jax.numpy as jnp
from jax.experimental import pallas as pl
from jax.experimental.pallas import tpu as pltpu


def _round_up(x, m):
    return ((x + m - 1) // m) * m


def _mlm_kernel(x_ref, w1_ref, b1_ref, gamma_ref, beta_ref,
                w2_ref, b2_ref, o_ref, h_ref):
    """Grid step (i, j):
         j == 0 : h_scratch = LayerNorm(ReLU(x_i @ W1 + b1))   (bf16 scratch)
         all j  : out[i, j] = h_scratch @ W2[:, j] + b2[j]
    """
    @pl.when(pl.program_id(1) == 0)
    def _():
        x = x_ref[...]                                           # (TM, D) bf16
        h = jnp.dot(x, w1_ref[...], preferred_element_type=jnp.float32)
        h = h + b1_ref[...]
        h = jnp.maximum(h, 0.0)                                  # ReLU (VPU)

        # One-pass LayerNorm statistics (sum + sum-of-squares -> mean/var).
        inv_n = 1.0 / h.shape[-1]
        mean = jnp.sum(h, axis=-1, keepdims=True) * inv_n
        mean_sq = jnp.sum(h * h, axis=-1, keepdims=True) * inv_n
        var = jnp.maximum(mean_sq - mean * mean, 0.0)
        hn = (h - mean) * jax.lax.rsqrt(var + 1e-5)              # eps = 1e-5 (PyTorch)
        hn = hn * gamma_ref[...] + beta_ref[...]
        h_ref[...] = hn.astype(h_ref.dtype)                      # cast once -> bf16

    y = jnp.dot(h_ref[...], w2_ref[...], preferred_element_type=jnp.float32)
    o_ref[...] = (y + b2_ref[...]).astype(o_ref.dtype)


@functools.partial(jax.jit, static_argnames=("tm", "tn"))
def mask_lm_forward(X, pred_positions, params, *, tm=128, tn=1024):
    """Pallas implementation of MaskLM.forward.

    X:               (batch, seq_len, num_inputs) float32
    pred_positions:  (batch, num_pred) int32
    returns          (batch, num_pred, vocab_size) float32
    """
    w1, b1 = params["w1"], params["b1"]
    gamma, beta = params["gamma"], params["beta"]
    w2, b2 = params["w2"], params["b2"]

    batch_size, _, num_inputs = X.shape
    num_pred = pred_positions.shape[1]
    num_hiddens = w1.shape[1]
    vocab_size = w2.shape[1]

    # ---- gather masked token representations (glue, plain JAX) ----
    # TODO(synk): could be fused into the kernel with PrefetchScalarGridSpec +
    # an Element row-gather BlockSpec; kept as XLA gather since masked_X is tiny.
    batch_idx = jnp.repeat(jnp.arange(batch_size), num_pred)     # (B*P,)
    pos_idx = pred_positions.reshape(-1)                         # (B*P,)
    masked_X = X[batch_idx, pos_idx]                             # (B*P, D)

    # ---- padding so all tiles are lane/sublane aligned and lane-dense ----
    m = batch_size * num_pred
    m_pad = _round_up(m, tm)
    v_pad = _round_up(vocab_size, 128)
    tn_eff = min(tn, v_pad)
    v_pad = _round_up(v_pad, tn_eff)

    masked_X = jnp.pad(masked_X, ((0, m_pad - m), (0, 0))).astype(jnp.bfloat16)
    w1_b = w1.astype(jnp.bfloat16)
    w2_b = jnp.pad(w2, ((0, 0), (0, v_pad - vocab_size))).astype(jnp.bfloat16)
    b2_p = jnp.pad(b2, ((0, 0), (0, v_pad - vocab_size)))

    grid = (m_pad // tm, v_pad // tn_eff)

    flops = 2 * m_pad * (num_inputs * num_hiddens + num_hiddens * v_pad)
    bytes_accessed = (masked_X.size * 2 + w1_b.size * 2 + w2_b.size * 2
                      + (b1.size + gamma.size + beta.size + b2_p.size) * 4
                      + m_pad * v_pad * 4)

    out = pl.pallas_call(
        _mlm_kernel,
        out_shape=jax.ShapeDtypeStruct((m_pad, v_pad), jnp.float32),
        grid_spec=pltpu.PrefetchScalarGridSpec(
            num_scalar_prefetch=0,
            grid=grid,
            in_specs=[
                pl.BlockSpec((tm, num_inputs), lambda i, j: (i, 0)),          # x tile
                pl.BlockSpec((num_inputs, num_hiddens), lambda i, j: (0, 0)),  # w1 (small)
                pl.BlockSpec((1, num_hiddens), lambda i, j: (0, 0)),          # b1
                pl.BlockSpec((1, num_hiddens), lambda i, j: (0, 0)),          # gamma
                pl.BlockSpec((1, num_hiddens), lambda i, j: (0, 0)),          # beta
                pl.BlockSpec((num_hiddens, tn_eff), lambda i, j: (0, j)),     # w2 tile (streamed)
                pl.BlockSpec((1, tn_eff), lambda i, j: (0, j)),               # b2 tile
            ],
            out_specs=pl.BlockSpec((tm, tn_eff), lambda i, j: (i, j)),
            scratch_shapes=[pltpu.VMEM((tm, num_hiddens), jnp.bfloat16)],     # LN output
        ),
        compiler_params=pltpu.CompilerParams(
            dimension_semantics=("parallel", "arbitrary")),
        cost_estimate=pl.CostEstimate(
            flops=flops, transcendentals=m_pad, bytes_accessed=bytes_accessed),
    )(masked_X, w1_b, b1, gamma, beta, w2_b, b2_p)

    out = out[:m, :vocab_size]                                    # drop padding
    return out.reshape(batch_size, num_pred, vocab_size)


def init_params(key, num_inputs, num_hiddens, vocab_size):
    """Deterministic synthetic parameters (PyTorch Linear stores (out,in);
    here weights are stored (in,out) so the kernel does x @ W directly)."""
    k1, k2, k3, k4 = jax.random.split(key, 4)
    s1 = 1.0 / jnp.sqrt(num_inputs)
    s2 = 1.0 / jnp.sqrt(num_hiddens)
    return {
        "w1": jax.random.uniform(k1, (num_inputs, num_hiddens),
                                 jnp.float32, -s1, s1),
        "b1": jax.random.uniform(k2, (1, num_hiddens), jnp.float32, -s1, s1),
        "gamma": jnp.ones((1, num_hiddens), jnp.float32),
        "beta": jnp.zeros((1, num_hiddens), jnp.float32),
        "w2": jax.random.uniform(k3, (num_hiddens, vocab_size),
                                 jnp.float32, -s2, s2),
        "b2": jax.random.uniform(k4, (1, vocab_size), jnp.float32, -s2, s2),
    }


def reference_forward(X, pred_positions, params):
    """Pure-JAX f32 reference mirroring the PyTorch module."""
    B, _, _ = X.shape
    P = pred_positions.shape[1]
    bidx = jnp.repeat(jnp.arange(B), P)
    masked = X[bidx, pred_positions.reshape(-1)].reshape(B, P, -1)
    h = masked @ params["w1"] + params["b1"][0]
    h = jnp.maximum(h, 0.0)
    mean = jnp.mean(h, axis=-1, keepdims=True)
    var = jnp.mean((h - mean) ** 2, axis=-1, keepdims=True)
    h = (h - mean) / jnp.sqrt(var + 1e-5)
    h = h * params["gamma"][0] + params["beta"][0]
    return h @ params["w2"] + params["b2"][0]


if __name__ == "__main__":
    # Small shapes consistent with the module's forward.
    batch_size = 2
    seq_len = 8
    num_inputs = 128      # stand-in for the default 768
    num_hiddens = 128
    vocab_size = 256
    num_pred = 3

    key = jax.random.PRNGKey(0)
    kx, kp = jax.random.split(key)
    X = jax.random.normal(kx, (batch_size, seq_len, num_inputs), jnp.float32)
    pred_positions = jnp.array([[1, 5, 2], [6, 1, 5]], dtype=jnp.int32)
    params = init_params(kp, num_inputs, num_hiddens, vocab_size)

    y = mask_lm_forward(X, pred_positions, params)
    y = jax.block_until_ready(y)

    y_ref = reference_forward(X, pred_positions, params)
    assert y.shape == (batch_size, num_pred, vocab_size), y.shape
    # bf16 matmul operands (f32 accumulation) vs f32 reference -> relaxed tol.
    assert jnp.allclose(y, y_ref, atol=3e-2, rtol=3e-2), "mismatch vs reference"

    print("KERNEL_OK")
</pallas_src>

<mosaic_0001>
module attributes {stable_mosaic.version = 11 : i64} {
  func.func @_mlm_kernel(%arg0: i32, %arg1: i32, %arg2: memref<128x128xbf16, #tpu.memory_space<vmem>>, %arg3: memref<128x128xbf16, #tpu.memory_space<vmem>>, %arg4: memref<1x128xf32, #tpu.memory_space<vmem>>, %arg5: memref<1x128xf32, #tpu.memory_space<vmem>>, %arg6: memref<1x128xf32, #tpu.memory_space<vmem>>, %arg7: memref<128x256xbf16, #tpu.memory_space<vmem>>, %arg8: memref<1x256xf32, #tpu.memory_space<vmem>>, %arg9: memref<128x256xf32, #tpu.memory_space<vmem>>, %arg10: memref<128x128xbf16, #tpu.memory_space<vmem>>) attributes {dimension_semantics = [#tpu.dimension_semantics<parallel>, #tpu.dimension_semantics<arbitrary>], iteration_bounds = array<i64: 1, 1>, scalar_prefetch = 0 : i64, scratch_operands = 1 : i64, tpu.core_type = #tpu.core_type<tc>, window_params = [{transform_indices = @transform_0, window_bounds = array<i64: 128, 128>}, {pipeline_mode = #tpu.pipeline_mode<synchronous>, transform_indices = @transform_1, window_bounds = array<i64: 128, 128>}, {pipeline_mode = #tpu.pipeline_mode<synchronous>, transform_indices = @transform_2, window_bounds = array<i64: 1, 128>}, {pipeline_mode = #tpu.pipeline_mode<synchronous>, transform_indices = @transform_3, window_bounds = array<i64: 1, 128>}, {pipeline_mode = #tpu.pipeline_mode<synchronous>, transform_indices = @transform_4, window_bounds = array<i64: 1, 128>}, {transform_indices = @transform_5, window_bounds = array<i64: 128, 256>}, {transform_indices = @transform_6, window_bounds = array<i64: 1, 256>}, {transform_indices = @transform_7, window_bounds = array<i64: 128, 256>}]} {
    %c0_i32 = arith.constant 0 : i32
    %0 = arith.cmpi eq, %arg1, %c0_i32 : i32
    %1 = arith.extui %0 : i1 to i32
    %c0_i32_0 = arith.constant 0 : i32
    %2 = arith.cmpi ne, %1, %c0_i32_0 : i32
    scf.if %2 {
      %c0_8 = arith.constant 0 : index
      %c0_9 = arith.constant 0 : index
      %10 = vector.load %arg2[%c0_8, %c0_9] : memref<128x128xbf16, #tpu.memory_space<vmem>>, vector<128x128xbf16>
      %c0_10 = arith.constant 0 : index
      %c0_11 = arith.constant 0 : index
      %11 = vector.load %arg3[%c0_10, %c0_11] : memref<128x128xbf16, #tpu.memory_space<vmem>>, vector<128x128xbf16>
      %cst_12 = arith.constant dense<0.000000e+00> : vector<128x128xf32>
      %12 = tpu.matmul %10, %11, %cst_12 {dimension_numbers = #tpu.dot_dimension_numbers<[1], [0], [0], [1], [0, 0, 1, 1], [], []>} : vector<128x128xbf16>, vector<128x128xbf16>, vector<128x128xf32> -> vector<128x128xf32>
      %c0_13 = arith.constant 0 : index
      %c0_14 = arith.constant 0 : index
      %13 = vector.load %arg4[%c0_13, %c0_14] : memref<1x128xf32, #tpu.memory_space<vmem>>, vector<1x128xf32>
      %14 = vector.broadcast %13 : vector<1x128xf32> to vector<128x128xf32>
      %15 = arith.addf %12, %14 : vector<128x128xf32>
      %cst_15 = arith.constant 0.000000e+00 : f32
      %16 = vector.broadcast %cst_15 : f32 to vector<128x128xf32>
      %17 = arith.maximumf %15, %16 : vector<128x128xf32>
      %cst_16 = arith.constant dense<0.000000e+00> : vector<128xf32>
      %18 = vector.multi_reduction <add>, %17, %cst_16 [1] : vector<128x128xf32> to vector<128xf32>
      %19 = vector.shape_cast %18 : vector<128xf32> to vector<128x1xf32>
      %cst_17 = arith.constant 7.812500e-03 : f32
      %20 = vector.broadcast %cst_17 : f32 to vector<128x1xf32>
      %21 = arith.mulf %19, %20 : vector<128x1xf32>
      %22 = arith.mulf %17, %17 : vector<128x128xf32>
      %cst_18 = arith.constant dense<0.000000e+00> : vector<128xf32>
      %23 = vector.multi_reduction <add>, %22, %cst_18 [1] : vector<128x128xf32> to vector<128xf32>
      %24 = vector.shape_cast %23 : vector<128xf32> to vector<128x1xf32>
      %cst_19 = arith.constant 7.812500e-03 : f32
      %25 = vector.broadcast %cst_19 : f32 to vector<128x1xf32>
      %26 = arith.mulf %24, %25 : vector<128x1xf32>
      %27 = arith.mulf %21, %21 : vector<128x1xf32>
      %28 = arith.subf %26, %27 : vector<128x1xf32>
      %cst_20 = arith.constant 0.000000e+00 : f32
      %29 = vector.broadcast %cst_20 : f32 to vector<128x1xf32>
      %30 = arith.maximumf %28, %29 : vector<128x1xf32>
      %31 = vector.broadcast %21 : vector<128x1xf32> to vector<128x128xf32>
      %32 = arith.subf %17, %31 : vector<128x128xf32>
      %cst_21 = arith.constant 9.99999974E-6 : f32
      %33 = vector.broadcast %cst_21 : f32 to vector<128x1xf32>
      %34 = arith.addf %30, %33 : vector<128x1xf32>
      %35 = math.rsqrt %34 : vector<128x1xf32>
      %36 = vector.broadcast %35 : vector<128x1xf32> to vector<128x128xf32>
      %37 = arith.mulf %32, %36 : vector<128x128xf32>
      %c0_22 = arith.constant 0 : index
      %c0_23 = arith.constant 0 : index
      %38 = vector.load %arg5[%c0_22, %c0_23] : memref<1x128xf32, #tpu.memory_space<vmem>>, vector<1x128xf32>
      %39 = vector.broadcast %38 : vector<1x128xf32> to vector<128x128xf32>
      %40 = arith.mulf %37, %39 : vector<128x128xf32>
      %c0_24 = arith.constant 0 : index
      %c0_25 = arith.constant 0 : index
      %41 = vector.load %arg6[%c0_24, %c0_25] : memref<1x128xf32, #tpu.memory_space<vmem>>, vector<1x128xf32>
      %42 = vector.broadcast %41 : vector<1x128xf32> to vector<128x128xf32>
      %43 = arith.addf %40, %42 : vector<128x128xf32>
      %44 = arith.truncf %43 : vector<128x128xf32> to vector<128x128xbf16>
      %c0_26 = arith.constant 0 : index
      %c0_27 = arith.constant 0 : index
      %45 = vector.load %arg10[%c0_26, %c0_27] : memref<128x128xbf16, #tpu.memory_space<vmem>>, vector<128x128xbf16>
      tpu.vector_store %arg10[%c0_26, %c0_27], %44 {strides = array<i32>} : memref<128x128xbf16, #tpu.memory_space<vmem>>, vector<128x128xbf16>,
    } else {
    }
    %c0 = arith.constant 0 : index
    %c0_1 = arith.constant 0 : index
    %3 = vector.load %arg10[%c0, %c0_1] : memref<128x128xbf16, #tpu.memory_space<vmem>>, vector<128x128xbf16>
    %c0_2 = arith.constant 0 : index
    %c0_3 = arith.constant 0 : index
    %4 = vector.load %arg7[%c0_2, %c0_3] : memref<128x256xbf16, #tpu.memory_space<vmem>>, vector<128x256xbf16>
    %cst = arith.constant dense<0.000000e+00> : vector<128x256xf32>
    %5 = tpu.matmul %3, %4, %cst {dimension_numbers = #tpu.dot_dimension_numbers<[1], [0], [0], [1], [0, 0, 1, 1], [], []>} : vector<128x128xbf16>, vector<128x256xbf16>, vector<128x256xf32> -> vector<128x256xf32>
    %c0_4 = arith.constant 0 : index
    %c0_5 = arith.constant 0 : index
    %6 = vector.load %arg8[%c0_4, %c0_5] : memref<1x256xf32, #tpu.memory_space<vmem>>, vector<1x256xf32>
    %7 = vector.broadcast %6 : vector<1x256xf32> to vector<128x256xf32>
    %8 = arith.addf %5, %7 : vector<128x256xf32>
    %c0_6 = arith.constant 0 : index
    %c0_7 = arith.constant 0 : index
    %9 = vector.load %arg9[%c0_6, %c0_7] : memref<128x256xf32, #tpu.memory_space<vmem>>, vector<128x256xf32>
    tpu.vector_store %arg9[%c0_6, %c0_7], %8 {strides = array<i32>} : memref<128x256xf32, #tpu.memory_space<vmem>>, vector<128x256xf32>,
    return
  }
  func.func @transform_0(%arg0: i32, %arg1: i32) -> (i32, i32) {
    %c0_i32 = arith.constant 0 : i32
    %c0_i32_0 = arith.constant 0 : i32
    return %arg0, %c0_i32 : i32, i32
  }
  func.func @transform_1(%arg0: i32, %arg1: i32) -> (i32, i32) {
    %c0_i32 = arith.constant 0 : i32
    %c0_i32_0 = arith.constant 0 : i32
    %c0_i32_1 = arith.constant 0 : i32
    return %c0_i32, %c0_i32_0 : i32, i32
  }
  func.func @transform_2(%arg0: i32, %arg1: i32) -> (i32, i32) {
    %c0_i32 = arith.constant 0 : i32
    %c0_i32_0 = arith.constant 0 : i32
    %c0_i32_1 = arith.constant 0 : i32
    return %c0_i32, %c0_i32_0 : i32, i32
  }
  func.func @transform_3(%arg0: i32, %arg1: i32) -> (i32, i32) {
    %c0_i32 = arith.constant 0 : i32
    %c0_i32_0 = arith.constant 0 : i32
    %c0_i32_1 = arith.constant 0 : i32
    return %c0_i32, %c0_i32_0 : i32, i32
  }
  func.func @transform_4(%arg0: i32, %arg1: i32) -> (i32, i32) {
    %c0_i32 = arith.constant 0 : i32
    %c0_i32_0 = arith.constant 0 : i32
    %c0_i32_1 = arith.constant 0 : i32
    return %c0_i32, %c0_i32_0 : i32, i32
  }
  func.func @transform_5(%arg0: i32, %arg1: i32) -> (i32, i32) {
    %c0_i32 = arith.constant 0 : i32
    %c0_i32_0 = arith.constant 0 : i32
    return %c0_i32, %arg1 : i32, i32
  }
  func.func @transform_6(%arg0: i32, %arg1: i32) -> (i32, i32) {
    %c0_i32 = arith.constant 0 : i32
    %c0_i32_0 = arith.constant 0 : i32
    return %c0_i32, %arg1 : i32, i32
  }
  func.func @transform_7(%arg0: i32, %arg1: i32) -> (i32, i32) {
    %c0_i32 = arith.constant 0 : i32
    return %arg0, %arg1 : i32, i32
  }
}

</mosaic_0001>

<llo_original>
// kernel: mask_lm_forward.1
$region0: #{mask_lm_forward.1}
  #allocation0 [shape = 'u32[]', space=smem, size = 0x4, offset = 0x4, fixed_abs, tag = 'smem constant byte address 0x4 - core index']
  #allocation1 [shape = 'u32[72,128]{1,0:T(1,128)}', space=vmem, size = 0x9000, scoped, tag = 'internal scratch']
  #allocation2 [shape = 'bf16[128,128]{1,0:T(8,128)(2,1)}', space=vmem, size = 0x8000, scoped, tag = 'scratch operand']
  %s0 = inlined_call_operand.vmem [shape: bf16[128,128], index: 0, kind: input, shape index: {}]
  %s1 = inlined_call_operand.vmem [shape: bf16[128,128], index: 1, kind: input, shape index: {}]
  %s2 = inlined_call_operand.vmem [shape: f32[1,128], index: 2, kind: input, shape index: {}]
  %s3 = inlined_call_operand.vmem [shape: f32[1,128], index: 3, kind: input, shape index: {}]
  %s4 = inlined_call_operand.vmem [shape: f32[1,128], index: 4, kind: input, shape index: {}]
  %s5 = inlined_call_operand.vmem [shape: bf16[128,256], index: 5, kind: input, shape index: {}]
  %s6 = inlined_call_operand.vmem [shape: f32[1,256], index: 6, kind: input, shape index: {}]
  %s7 = inlined_call_operand.vmem [shape: f32[128,256], index: 7, kind: output, shape index: {}]
  %s8 = sld [smem:[#allocation0]]
  $region42: #{mask_lm_forward.1} parent=0
    _
  %s10 = ssub.s32 1, %s8
  %s11 = scalar_select 0, %s10, %s8
  // Predicated region
  $region2: #{mask_lm_forward.1} parent=0 // pred_check
    _
  $region3: #{mask_lm_forward.1} parent=0 // pred_check_branch
    %13 = sbr.rel (0) target = $region5
  $region4: #{mask_lm_forward.1} parent=0 // pred_region
    _
  $region5: #{mask_lm_forward.1} parent=0 // pred_fallthru
    _
  // Predicated region
  $region6: #{mask_lm_forward.1} parent=0 // pred_check
    _
  $region7: #{mask_lm_forward.1} parent=0 // pred_check_branch
    %15 = sbr.rel (0) target = $region9
  $region8: #{mask_lm_forward.1} parent=0 // pred_region
    _
  $region9: #{mask_lm_forward.1} parent=0 // pred_fallthru
    _
  // Predicated region
  $region10: #{mask_lm_forward.1} parent=0 // pred_check
    _
  $region11: #{mask_lm_forward.1} parent=0 // pred_check_branch
    %17 = sbr.rel (0) target = $region13
  $region12: #{mask_lm_forward.1} parent=0 // pred_region
    _
  $region13: #{mask_lm_forward.1} parent=0 // pred_fallthru
    _
  // Predicated region
  $region14: #{mask_lm_forward.1} parent=0 // pred_check
    _
  $region15: #{mask_lm_forward.1} parent=0 // pred_check_branch
    %19 = sbr.rel (0) target = $region17
  $region16: #{mask_lm_forward.1} parent=0 // pred_region
    _
  $region17: #{mask_lm_forward.1} parent=0 // pred_fallthru
    _
  // Predicated region
  $region18: #{mask_lm_forward.1} parent=0 // pred_check
    _
  $region19: #{mask_lm_forward.1} parent=0 // pred_check_branch
    %21 = sbr.rel (0) target = $region21
  $region20: #{mask_lm_forward.1} parent=0 // pred_region
    _
  $region21: #{mask_lm_forward.1} parent=0 // pred_fallthru
    _
  // Predicated region
  $region22: #{mask_lm_forward.1} parent=0 // pred_check
    _
  $region23: #{mask_lm_forward.1} parent=0 // pred_check_branch
    %23 = sbr.rel (0) target = $region25
  $region24: #{mask_lm_forward.1} parent=0 // pred_region
    _
  $region25: #{mask_lm_forward.1} parent=0 // pred_fallthru
    _
  // Predicated region
  $region26: #{mask_lm_forward.1} parent=0 // pred_check
    _
  $region27: #{mask_lm_forward.1} parent=0 // pred_check_branch
    %25 = sbr.rel (0) target = $region29
  $region28: #{mask_lm_forward.1} parent=0 // pred_region
    _
  $region29: #{mask_lm_forward.1} parent=0 // pred_fallthru
    _
  %p26 = scmp.eq.s32.totalorder 0, 0
  // Predicated region
  $region30: #{mask_lm_forward.1} parent=0 // pred_check
    %p27 = pneg %p26
  $region31: #{mask_lm_forward.1} parent=0 // pred_check_branch
    %29 = sbr.rel (%p27) target = $region33
  $region32: #{mask_lm_forward.1} parent=0 // pred_region
    %v30 = vld [vmem:[%s0] sm:$0xf]
    %v31 = vld [vmem:[%s0 + $0x4] sm:$0xf]
    %v32 = vld [vmem:[%s0 + $0x8] sm:$0xf]
    %v33 = vld [vmem:[%s0 + $0xc] sm:$0xf]
    %v34 = vld [vmem:[%s0 + $0x10] sm:$0xf]
    %v35 = vld [vmem:[%s0 + $0x14] sm:$0xf]
    %v36 = vld [vmem:[%s0 + $0x18] sm:$0xf]
    %v37 = vld [vmem:[%s0 + $0x1c] sm:$0xf]
    %v38 = vld [vmem:[%s0 + $0x20] sm:$0xf]
    %v39 = vld [vmem:[%s0 + $0x24] sm:$0xf]
    %v40 = vld [vmem:[%s0 + $0x28] sm:$0xf]
    %v41 = vld [vmem:[%s0 + $0x2c] sm:$0xf]
    %v42 = vld [vmem:[%s0 + $0x30] sm:$0xf]
    %v43 = vld [vmem:[%s0 + $0x34] sm:$0xf]
    %v44 = vld [vmem:[%s0 + $0x38] sm:$0xf]
    %v45 = vld [vmem:[%s0 + $0x3c] sm:$0xf]
    %v46 = vld [vmem:[%s1] sm:$0xf]
    %v47 = vld [vmem:[%s1 + $0x4] sm:$0xf]
    %v48 = vld [vmem:[%s1 + $0x8] sm:$0xf]
    %v49 = vld [vmem:[%s1 + $0xc] sm:$0xf]
    %v50 = vld [vmem:[%s1 + $0x10] sm:$0xf]
    %v51 = vld [vmem:[%s1 + $0x14] sm:$0xf]
    %v52 = vld [vmem:[%s1 + $0x18] sm:$0xf]
    %v53 = vld [vmem:[%s1 + $0x1c] sm:$0xf]
    %v54 = vld [vmem:[%s1 + $0x20] sm:$0xf]
    %v55 = vld [vmem:[%s1 + $0x24] sm:$0xf]
    %v56 = vld [vmem:[%s1 + $0x28] sm:$0xf]
    %v57 = vld [vmem:[%s1 + $0x2c] sm:$0xf]
    %v58 = vld [vmem:[%s1 + $0x30] sm:$0xf]
    %v59 = vld [vmem:[%s1 + $0x34] sm:$0xf]
    %v60 = vld [vmem:[%s1 + $0x38] sm:$0xf]
    %v61 = vld [vmem:[%s1 + $0x3c] sm:$0xf]
    %v62 = vld [vmem:[%s2] sm:$0x1]
    %v64 = vperm.slane %v62, 0
    %v82 = vunpack.c.l.b16 %v30
    %v83 = vunpack.c.l.b16 %v31
    %v84 = vunpack.c.l.b16 %v32
    %v85 = vunpack.c.l.b16 %v33
    %v86 = vunpack.c.l.b16 %v34
    %v87 = vunpack.c.l.b16 %v35
    %v88 = vunpack.c.l.b16 %v36
    %v89 = vunpack.c.l.b16 %v37
    %v90 = vunpack.c.l.b16 %v38
    %v91 = vunpack.c.l.b16 %v39
    %v92 = vunpack.c.l.b16 %v40
    %v93 = vunpack.c.l.b16 %v41
    %v94 = vunpack.c.l.b16 %v42
    %v95 = vunpack.c.l.b16 %v43
    %v96 = vunpack.c.l.b16 %v44
    %v97 = vunpack.c.l.b16 %v45
    %v98 = vpack.c.b16 %v83, %v82
    %v99 = vpack.c.b16 %v85, %v84
    %v100 = vpack.c.b16 %v87, %v86
    %v101 = vpack.c.b16 %v89, %v88
    %v102 = vpack.c.b16 %v91, %v90
    %v103 = vpack.c.b16 %v93, %v92
    %v104 = vpack.c.b16 %v95, %v94
    %v105 = vpack.c.b16 %v97, %v96
    %v130 = vunpack.c.l.b16 %v46
    %v131 = vunpack.c.l.b16 %v47
    %v132 = vunpack.c.l.b16 %v48
    %v133 = vunpack.c.l.b16 %v49
    %v134 = vunpack.c.l.b16 %v50
    %v135 = vunpack.c.l.b16 %v51
    %v136 = vunpack.c.l.b16 %v52
    %v137 = vunpack.c.l.b16 %v53
    %v138 = vunpack.c.l.b16 %v54
    %v139 = vunpack.c.l.b16 %v55
    %v140 = vunpack.c.l.b16 %v56
    %v141 = vunpack.c.l.b16 %v57
    %v142 = vunpack.c.l.b16 %v58
    %v143 = vunpack.c.l.b16 %v59
    %v144 = vunpack.c.l.b16 %v60
    %v145 = vunpack.c.l.b16 %v61
    %v146 = vpack.c.b16 %v131, %v130
    %v147 = vpack.c.b16 %v133, %v132
    %v148 = vpack.c.b16 %v135, %v134
    %v149 = vpack.c.b16 %v137, %v136
    %v150 = vpack.c.b16 %v139, %v138
    %v151 = vpack.c.b16 %v141, %v140
    %v152 = vpack.c.b16 %v143, %v142
    %v153 = vpack.c.b16 %v145, %v144
    %162 = vmatpush.bf16.msra.mxu0 %v153
    %163 = vmatpush.bf16.msra.mxu0 %v152
    %164 = vmatpush.bf16.msra.mxu0 %v151
    %165 = vmatpush.bf16.msra.mxu0 %v150
    %166 = vmatpush.bf16.msra.mxu0 %v149
    %167 = vmatpush.bf16.msra.mxu0 %v148
    %168 = vmatpush.bf16.msra.mxu0 %v147
    %169 = vmatpush.bf16.msra.mxu0 %v146
    %170 = vmatmul.bf16.gmra.mxu0 %v98
    %v171 = vpop.f32.mrf.mxu0
    %v172 = vadd.f32 %v64, %v171
    %v173 = vpop.f32.mrf.mxu0
    %v174 = vadd.f32 %v64, %v173
    %175 = vmatmul.bf16.gmra.mxu0 %v99
    %v176 = vpop.f32.mrf.mxu0
    %v177 = vadd.f32 %v64, %v176
    %v178 = vpop.f32.mrf.mxu0
    %v179 = vadd.f32 %v64, %v178
    %180 = vmatmul.bf16.gmra.mxu0 %v100
    %v181 = vpop.f32.mrf.mxu0
    %v182 = vadd.f32 %v64, %v181
    %v183 = vpop.f32.mrf.mxu0
    %v184 = vadd.f32 %v64, %v183
    %185 = vmatmul.bf16.gmra.mxu0 %v101
    %v186 = vpop.f32.mrf.mxu0
    %v187 = vadd.f32 %v64, %v186
    %v188 = vpop.f32.mrf.mxu0
    %v189 = vadd.f32 %v64, %v188
    %190 = vmatmul.bf16.gmra.mxu0 %v102
    %v191 = vpop.f32.mrf.mxu0
    %v192 = vadd.f32 %v64, %v191
    %v193 = vpop.f32.mrf.mxu0
    %v194 = vadd.f32 %v64, %v193
    %195 = vmatmul.bf16.gmra.mxu0 %v103
    %v196 = vpop.f32.mrf.mxu0
    %v197 = vadd.f32 %v64, %v196
    %v198 = vpop.f32.mrf.mxu0
    %v199 = vadd.f32 %v64, %v198
    %200 = vmatmul.bf16.gmra.mxu0 %v104
    %v201 = vpop.f32.mrf.mxu0
    %v202 = vadd.f32 %v64, %v201
    %v203 = vpop.f32.mrf.mxu0
    %v204 = vadd.f32 %v64, %v203
    %205 = vmatmul.bf16.gmra.mxu0 %v105
    %v206 = vpop.f32.mrf.mxu0
    %v207 = vadd.f32 %v64, %v206
    %v208 = vpop.f32.mrf.mxu0
    %v209 = vadd.f32 %v64, %v208
    %210 = vdwg.mxu0
    %v211 = vmax.f32 %v172, 0.0
    %v212 = vmax.f32 %v174, 0.0
    %v213 = vmax.f32 %v177, 0.0
    %v214 = vmax.f32 %v179, 0.0
    %v215 = vmax.f32 %v182, 0.0
    %v216 = vmax.f32 %v184, 0.0
    %v217 = vmax.f32 %v187, 0.0
    %v218 = vmax.f32 %v189, 0.0
    %v219 = vmax.f32 %v192, 0.0
    %v220 = vmax.f32 %v194, 0.0
    %v221 = vmax.f32 %v197, 0.0
    %v222 = vmax.f32 %v199, 0.0
    %v223 = vmax.f32 %v202, 0.0
    %v224 = vmax.f32 %v204, 0.0
    %v225 = vmax.f32 %v207, 0.0
    %v226 = vmax.f32 %v209, 0.0
    %227 = vadd.xlane.f32.xlu0 %v211
    %v228 = vpop.xlane.xlu0 %227
    %229 = vadd.xlane.f32.xlu0 %v212
    %v230 = vpop.xlane.xlu0 %229
    %231 = vadd.xlane.f32.xlu0 %v213
    %v232 = vpop.xlane.xlu0 %231
    %233 = vadd.xlane.f32.xlu0 %v214
    %v234 = vpop.xlane.xlu0 %233
    %235 = vadd.xlane.f32.xlu0 %v215
    %v236 = vpop.xlane.xlu0 %235
    %237 = vadd.xlane.f32.xlu0 %v216
    %v238 = vpop.xlane.xlu0 %237
    %239 = vadd.xlane.f32.xlu0 %v217
    %v240 = vpop.xlane.xlu0 %239
    %241 = vadd.xlane.f32.xlu0 %v218
    %v242 = vpop.xlane.xlu0 %241
    %243 = vadd.xlane.f32.xlu0 %v219
    %v244 = vpop.xlane.xlu0 %243
    %245 = vadd.xlane.f32.xlu0 %v220
    %v246 = vpop.xlane.xlu0 %245
    %247 = vadd.xlane.f32.xlu0 %v221
    %v248 = vpop.xlane.xlu0 %247
    %249 = vadd.xlane.f32.xlu0 %v222
    %v250 = vpop.xlane.xlu0 %249
    %251 = vadd.xlane.f32.xlu0 %v223
    %v252 = vpop.xlane.xlu0 %251
    %253 = vadd.xlane.f32.xlu0 %v224
    %v254 = vpop.xlane.xlu0 %253
    %255 = vadd.xlane.f32.xlu0 %v225
    %v256 = vpop.xlane.xlu0 %255
    %257 = vadd.xlane.f32.xlu0 %v226
    %v258 = vpop.xlane.xlu0 %257
    %v259 = vmul.f32 %v228, 0.0078125
    %v260 = vmul.f32 %v230, 0.0078125
    %v261 = vmul.f32 %v232, 0.0078125
    %v262 = vmul.f32 %v234, 0.0078125
    %v263 = vmul.f32 %v236, 0.0078125
    %v264 = vmul.f32 %v238, 0.0078125
    %v265 = vmul.f32 %v240, 0.0078125
    %v266 = vmul.f32 %v242, 0.0078125
    %v267 = vmul.f32 %v244, 0.0078125
    %v268 = vmul.f32 %v246, 0.0078125
    %v269 = vmul.f32 %v248, 0.0078125
    %v270 = vmul.f32 %v250, 0.0078125
    %v271 = vmul.f32 %v252, 0.0078125
    %v272 = vmul.f32 %v254, 0.0078125
    %v273 = vmul.f32 %v256, 0.0078125
    %v274 = vmul.f32 %v258, 0.0078125
    %v275 = vmul.f32 %v211, %v211
    %v276 = vmul.f32 %v212, %v212
    %v277 = vmul.f32 %v213, %v213
    %v278 = vmul.f32 %v214, %v214
    %v279 = vmul.f32 %v215, %v215
    %v280 = vmul.f32 %v216, %v216
    %v281 = vmul.f32 %v217, %v217
    %v282 = vmul.f32 %v218, %v218
    %v283 = vmul.f32 %v219, %v219
    %v284 = vmul.f32 %v220, %v220
    %v285 = vmul.f32 %v221, %v221
    %v286 = vmul.f32 %v222, %v222
    %v287 = vmul.f32 %v223, %v223
    %v288 = vmul.f32 %v224, %v224
    %v289 = vmul.f32 %v225, %v225
    %v290 = vmul.f32 %v226, %v226
    %291 = vadd.xlane.f32.xlu0 %v275
    %v292 = vpop.xlane.xlu0 %291
    %293 = vadd.xlane.f32.xlu0 %v276
    %v294 = vpop.xlane.xlu0 %293
    %295 = vadd.xlane.f32.xlu0 %v277
    %v296 = vpop.xlane.xlu0 %295
    %297 = vadd.xlane.f32.xlu0 %v278
    %v298 = vpop.xlane.xlu0 %297
    %299 = vadd.xlane.f32.xlu0 %v279
    %v300 = vpop.xlane.xlu0 %299
    %301 = vadd.xlane.f32.xlu0 %v280
    %v302 = vpop.xlane.xlu0 %301
    %303 = vadd.xlane.f32.xlu0 %v281
    %v304 = vpop.xlane.xlu0 %303
    %305 = vadd.xlane.f32.xlu0 %v282
    %v306 = vpop.xlane.xlu0 %305
    %307 = vadd.xlane.f32.xlu0 %v283
    %v308 = vpop.xlane.xlu0 %307
    %309 = vadd.xlane.f32.xlu0 %v284
    %v310 = vpop.xlane.xlu0 %309
    %311 = vadd.xlane.f32.xlu0 %v285
    %v312 = vpop.xlane.xlu0 %311
    %313 = vadd.xlane.f32.xlu0 %v286
    %v314 = vpop.xlane.xlu0 %313
    %315 = vadd.xlane.f32.xlu0 %v287
    %v316 = vpop.xlane.xlu0 %315
    %317 = vadd.xlane.f32.xlu0 %v288
    %v318 = vpop.xlane.xlu0 %317
    %319 = vadd.xlane.f32.xlu0 %v289
    %v320 = vpop.xlane.xlu0 %319
    %321 = vadd.xlane.f32.xlu0 %v290
    %v322 = vpop.xlane.xlu0 %321
    %v323 = vmul.f32 %v292, 0.0078125
    %v324 = vmul.f32 %v294, 0.0078125
    %v325 = vmul.f32 %v296, 0.0078125
    %v326 = vmul.f32 %v298, 0.0078125
    %v327 = vmul.f32 %v300, 0.0078125
    %v328 = vmul.f32 %v302, 0.0078125
    %v329 = vmul.f32 %v304, 0.0078125
    %v330 = vmul.f32 %v306, 0.0078125
    %v331 = vmul.f32 %v308, 0.0078125
    %v332 = vmul.f32 %v310, 0.0078125
    %v333 = vmul.f32 %v312, 0.0078125
    %v334 = vmul.f32 %v314, 0.0078125
    %v335 = vmul.f32 %v316, 0.0078125
    %v336 = vmul.f32 %v318, 0.0078125
    %v337 = vmul.f32 %v320, 0.0078125
    %v338 = vmul.f32 %v322, 0.0078125
    %v339 = vmul.f32 %v259, %v259
    %v340 = vmul.f32 %v260, %v260
    %v341 = vmul.f32 %v261, %v261
    %v342 = vmul.f32 %v262, %v262
    %v343 = vmul.f32 %v263, %v263
    %v344 = vmul.f32 %v264, %v264
    %v345 = vmul.f32 %v265, %v265
    %v346 = vmul.f32 %v266, %v266
    %v347 = vmul.f32 %v267, %v267
    %v348 = vmul.f32 %v268, %v268
    %v349 = vmul.f32 %v269, %v269
    %v350 = vmul.f32 %v270, %v270
    %v351 = vmul.f32 %v271, %v271
    %v352 = vmul.f32 %v272, %v272
    %v353 = vmul.f32 %v273, %v273
    %v354 = vmul.f32 %v274, %v274
    %v355 = vsub.f32 %v323, %v339
    %v356 = vsub.f32 %v324, %v340
    %v357 = vsub.f32 %v325, %v341
    %v358 = vsub.f32 %v326, %v342
    %v359 = vsub.f32 %v327, %v343
    %v360 = vsub.f32 %v328, %v344
    %v361 = vsub.f32 %v329, %v345
    %v362 = vsub.f32 %v330, %v346
    %v363 = vsub.f32 %v331, %v347
    %v364 = vsub.f32 %v332, %v348
    %v365 = vsub.f32 %v333, %v349
    %v366 = vsub.f32 %v334, %v350
    %v367 = vsub.f32 %v335, %v351
    %v368 = vsub.f32 %v336, %v352
    %v369 = vsub.f32 %v337, %v353
    %v370 = vsub.f32 %v338, %v354
    %v371 = vmax.f32 %v355, 0.0
    %v372 = vmax.f32 %v356, 0.0
    %v373 = vmax.f32 %v357, 0.0
    %v374 = vmax.f32 %v358, 0.0
    %v375 = vmax.f32 %v359, 0.0
    %v376 = vmax.f32 %v360, 0.0
    %v377 = vmax.f32 %v361, 0.0
    %v378 = vmax.f32 %v362, 0.0
    %v379 = vmax.f32 %v363, 0.0
    %v380 = vmax.f32 %v364, 0.0
    %v381 = vmax.f32 %v365, 0.0
    %v382 = vmax.f32 %v366, 0.0
    %v383 = vmax.f32 %v367, 0.0
    %v384 = vmax.f32 %v368, 0.0
    %v385 = vmax.f32 %v369, 0.0
    %v386 = vmax.f32 %v370, 0.0
    %v387 = vsub.f32 %v211, %v259
    %v388 = vsub.f32 %v212, %v260
    %v389 = vsub.f32 %v213, %v261
    %v390 = vsub.f32 %v214, %v262
    %v391 = vsub.f32 %v215, %v263
    %v392 = vsub.f32 %v216, %v264
    %v393 = vsub.f32 %v217, %v265
    %v394 = vsub.f32 %v218, %v266
    %v395 = vsub.f32 %v219, %v267
    %v396 = vsub.f32 %v220, %v268
    %v397 = vsub.f32 %v221, %v269
    %v398 = vsub.f32 %v222, %v270
    %v399 = vsub.f32 %v223, %v271
    %v400 = vsub.f32 %v224, %v272
    %v401 = vsub.f32 %v225, %v273
    %v402 = vsub.f32 %v226, %v274
    %v403 = vadd.f32 %v371, 1e-05
    %v404 = vadd.f32 %v372, 1e-05
    %v405 = vadd.f32 %v373, 1e-05
    %v406 = vadd.f32 %v374, 1e-05
    %v407 = vadd.f32 %v375, 1e-05
    %v408 = vadd.f32 %v376, 1e-05
    %v409 = vadd.f32 %v377, 1e-05
    %v410 = vadd.f32 %v378, 1e-05
    %v411 = vadd.f32 %v379, 1e-05
    %v412 = vadd.f32 %v380, 1e-05
    %v413 = vadd.f32 %v381, 1e-05
    %v414 = vadd.f32 %v382, 1e-05
    %v415 = vadd.f32 %v383, 1e-05
    %v416 = vadd.f32 %v384, 1e-05
    %v417 = vadd.f32 %v385, 1e-05
    %v418 = vadd.f32 %v386, 1e-05
    %v419 = vrsqrt.pop %v403
    %v420 = vmul.f32 %v419, %v403
    %v421 = vmul.f32 %v420, %v419
    %v422 = vmul.f32 0.5, %v421
    %v423 = vsub.f32 1.5, %v422
    %v424 = vmul.f32 %v419, %v423
    %vm425 = vweird.f32 %v403
    %vm426 = vweird.f32 %v419
    %vm427 = vmor %vm425, %vm426
    %v428 = vsel %vm427, %v419, %v424
    %v429 = vrsqrt.pop %v404
    %v430 = vmul.f32 %v429, %v404
    %v431 = vmul.f32 %v430, %v429
    %v432 = vmul.f32 0.5, %v431
    %v433 = vsub.f32 1.5, %v432
    %v434 = vmul.f32 %v429, %v433
    %vm435 = vweird.f32 %v404
    %vm436 = vweird.f32 %v429
    %vm437 = vmor %vm435, %vm436
    %v438 = vsel %vm437, %v429, %v434
    %v439 = vrsqrt.pop %v405
    %v440 = vmul.f32 %v439, %v405
    %v441 = vmul.f32 %v440, %v439
    %v442 = vmul.f32 0.5, %v441
    %v443 = vsub.f32 1.5, %v442
    %v444 = vmul.f32 %v439, %v443
    %vm445 = vweird.f32 %v405
    %vm446 = vweird.f32 %v439
    %vm447 = vmor %vm445, %vm446
    %v448 = vsel %vm447, %v439, %v444
    %v449 = vrsqrt.pop %v406
    %v450 = vmul.f32 %v449, %v406
    %v451 = vmul.f32 %v450, %v449
    %v452 = vmul.f32 0.5, %v451
    %v453 = vsub.f32 1.5, %v452
    %v454 = vmul.f32 %v449, %v453
    %vm455 = vweird.f32 %v406
    %vm456 = vweird.f32 %v449
    %vm457 = vmor %vm455, %vm456
    %v458 = vsel %vm457, %v449, %v454
    %v459 = vrsqrt.pop %v407
    %v460 = vmul.f32 %v459, %v407
    %v461 = vmul.f32 %v460, %v459
    %v462 = vmul.f32 0.5, %v461
    %v463 = vsub.f32 1.5, %v462
    %v464 = vmul.f32 %v459, %v463
    %vm465 = vweird.f32 %v407
    %vm466 = vweird.f32 %v459
    %vm467 = vmor %vm465, %vm466
    %v468 = vsel %vm467, %v459, %v464
    %v469 = vrsqrt.pop %v408
    %v470 = vmul.f32 %v469, %v408
    %v471 = vmul.f32 %v470, %v469
    %v472 = vmul.f32 0.5, %v471
    %v473 = vsub.f32 1.5, %v472
    %v474 = vmul.f32 %v469, %v473
    %vm475 = vweird.f32 %v408
    %vm476 = vweird.f32 %v469
    %vm477 = vmor %vm475, %vm476
    %v478 = vsel %vm477, %v469, %v474
    %v479 = vrsqrt.pop %v409
    %v480 = vmul.f32 %v479, %v409
    %v481 = vmul.f32 %v480, %v479
    %v482 = vmul.f32 0.5, %v481
    %v483 = vsub.f32 1.5, %v482
    %v484 = vmul.f32 %v479, %v483
    %vm485 = vweird.f32 %v409
    %vm486 = vweird.f32 %v479
    %vm487 = vmor %vm485, %vm486
    %v488 = vsel %vm487, %v479, %v484
    %v489 = vrsqrt.pop %v410
    %v490 = vmul.f32 %v489, %v410
    %v491 = vmul.f32 %v490, %v489
    %v492 = vmul.f32 0.5, %v491
    %v493 = vsub.f32 1.5, %v492
    %v494 = vmul.f32 %v489, %v493
    %vm495 = vweird.f32 %v410
    %vm496 = vweird.f32 %v489
    %vm497 = vmor %vm495, %vm496
    %v498 = vsel %vm497, %v489, %v494
    %v499 = vrsqrt.pop %v411
    %v500 = vmul.f32 %v499, %v411
    %v501 = vmul.f32 %v500, %v499
    %v502 = vmul.f32 0.5, %v501
    %v503 = vsub.f32 1.5, %v502
    %v504 = vmul.f32 %v499, %v503
    %vm505 = vweird.f32 %v411
    %vm506 = vweird.f32 %v499
    %vm507 = vmor %vm505, %vm506
    %v508 = vsel %vm507, %v499, %v504
    %v509 = vrsqrt.pop %v412
    %v510 = vmul.f32 %v509, %v412
    %v511 = vmul.f32 %v510, %v509
    %v512 = vmul.f32 0.5, %v511
    %v513 = vsub.f32 1.5, %v512
    %v514 = vmul.f32 %v509, %v513
    %vm515 = vweird.f32 %v412
    %vm516 = vweird.f32 %v509
    %vm517 = vmor %vm515, %vm516
    %v518 = vsel %vm517, %v509, %v514
    %v519 = vrsqrt.pop %v413
    %v520 = vmul.f32 %v519, %v413
    %v521 = vmul.f32 %v520, %v519
    %v522 = vmul.f32 0.5, %v521
    %v523 = vsub.f32 1.5, %v522
    %v524 = vmul.f32 %v519, %v523
    %vm525 = vweird.f32 %v413
    %vm526 = vweird.f32 %v519
    %vm527 = vmor %vm525, %vm526
    %v528 = vsel %vm527, %v519, %v524
    %v529 = vrsqrt.pop %v414
    %v530 = vmul.f32 %v529, %v414
    %v531 = vmul.f32 %v530, %v529
    %v532 = vmul.f32 0.5, %v531
    %v533 = vsub.f32 1.5, %v532
    %v534 = vmul.f32 %v529, %v533
    %vm535 = vweird.f32 %v414
    %vm536 = vweird.f32 %v529
    %vm537 = vmor %vm535, %vm536
    %v538 = vsel %vm537, %v529, %v534
    %v539 = vrsqrt.pop %v415
    %v540 = vmul.f32 %v539, %v415
    %v541 = vmul.f32 %v540, %v539
    %v542 = vmul.f32 0.5, %v541
    %v543 = vsub.f32 1.5, %v542
    %v544 = vmul.f32 %v539, %v543
    %vm545 = vweird.f32 %v415
    %vm546 = vweird.f32 %v539
    %vm547 = vmor %vm545, %vm546
    %v548 = vsel %vm547, %v539, %v544
    %v549 = vrsqrt.pop %v416
    %v550 = vmul.f32 %v549, %v416
    %v551 = vmul.f32 %v550, %v549
    %v552 = vmul.f32 0.5, %v551
    %v553 = vsub.f32 1.5, %v552
    %v554 = vmul.f32 %v549, %v553
    %vm555 = vweird.f32 %v416
    %vm556 = vweird.f32 %v549
    %vm557 = vmor %vm555, %vm556
    %v558 = vsel %vm557, %v549, %v554
    %v559 = vrsqrt.pop %v417
    %v560 = vmul.f32 %v559, %v417
    %v561 = vmul.f32 %v560, %v559
    %v562 = vmul.f32 0.5, %v561
    %v563 = vsub.f32 1.5, %v562
    %v564 = vmul.f32 %v559, %v563
    %vm565 = vweird.f32 %v417
    %vm566 = vweird.f32 %v559
    %vm567 = vmor %vm565, %vm566
    %v568 = vsel %vm567, %v559, %v564
    %v569 = vrsqrt.pop %v418
    %v570 = vmul.f32 %v569, %v418
    %v571 = vmul.f32 %v570, %v569
    %v572 = vmul.f32 0.5, %v571
    %v573 = vsub.f32 1.5, %v572
    %v574 = vmul.f32 %v569, %v573
    %vm575 = vweird.f32 %v418
    %vm576 = vweird.f32 %v569
    %vm577 = vmor %vm575, %vm576
    %v578 = vsel %vm577, %v569, %v574
    %v579 = vmul.f32 %v387, %v428
    %v580 = vmul.f32 %v388, %v438
    %v581 = vmul.f32 %v389, %v448
    %v582 = vmul.f32 %v390, %v458
    %v583 = vmul.f32 %v391, %v468
    %v584 = vmul.f32 %v392, %v478
    %v585 = vmul.f32 %v393, %v488
    %v586 = vmul.f32 %v394, %v498
    %v587 = vmul.f32 %v395, %v508
    %v588 = vmul.f32 %v396, %v518
    %v589 = vmul.f32 %v397, %v528
    %v590 = vmul.f32 %v398, %v538
    %v591 = vmul.f32 %v399, %v548
    %v592 = vmul.f32 %v400, %v558
    %v593 = vmul.f32 %v401, %v568
    %v594 = vmul.f32 %v402, %v578
    %v595 = vld [vmem:[%s3] sm:$0x1]
    %v597 = vperm.slane %v595, 0
    %v599 = vmul.f32 %v579, %v597
    %v600 = vmul.f32 %v580, %v597
    %v601 = vmul.f32 %v581, %v597
    %v602 = vmul.f32 %v582, %v597
    %v603 = vmul.f32 %v583, %v597
    %v604 = vmul.f32 %v584, %v597
    %v605 = vmul.f32 %v585, %v597
    %v606 = vmul.f32 %v586, %v597
    %v607 = vmul.f32 %v587, %v597
    %v608 = vmul.f32 %v588, %v597
    %v609 = vmul.f32 %v589, %v597
    %v610 = vmul.f32 %v590, %v597
    %v611 = vmul.f32 %v591, %v597
    %v612 = vmul.f32 %v592, %v597
    %v613 = vmul.f32 %v593, %v597
    %v614 = vmul.f32 %v594, %v597
    %v615 = vld [vmem:[%s4] sm:$0x1]
    %v617 = vperm.slane %v615, 0
    %v619 = vadd.f32 %v599, %v617
    %v620 = vadd.f32 %v600, %v617
    %v621 = vadd.f32 %v601, %v617
    %v622 = vadd.f32 %v602, %v617
    %v623 = vadd.f32 %v603, %v617
    %v624 = vadd.f32 %v604, %v617
    %v625 = vadd.f32 %v605, %v617
    %v626 = vadd.f32 %v606, %v617
    %v627 = vadd.f32 %v607, %v617
    %v628 = vadd.f32 %v608, %v617
    %v629 = vadd.f32 %v609, %v617
    %v630 = vadd.f32 %v610, %v617
    %v631 = vadd.f32 %v611, %v617
    %v632 = vadd.f32 %v612, %v617
    %v633 = vadd.f32 %v613, %v617
    %v634 = vadd.f32 %v614, %v617
    %v635 = vpack.c.bf16 %v619, %v619
    %v636 = vpack.c.bf16 %v620, %v620
    %v637 = vpack.c.bf16 %v621, %v621
    %v638 = vpack.c.bf16 %v622, %v622
    %v639 = vpack.c.bf16 %v623, %v623
    %v640 = vpack.c.bf16 %v624, %v624
    %v641 = vpack.c.bf16 %v625, %v625
    %v642 = vpack.c.bf16 %v626, %v626
    %v643 = vpack.c.bf16 %v627, %v627
    %v644 = vpack.c.bf16 %v628, %v628
    %v645 = vpack.c.bf16 %v629, %v629
    %v646 = vpack.c.bf16 %v630, %v630
    %v647 = vpack.c.bf16 %v631, %v631
    %v648 = vpack.c.bf16 %v632, %v632
    %v649 = vpack.c.bf16 %v633, %v633
    %v650 = vpack.c.bf16 %v634, %v634
    %651 = vst [vmem:[#allocation2] sm:$0xf] %v635
    %652 = vst [vmem:[#allocation2 + $0x4] sm:$0xf] %v636
    %653 = vst [vmem:[#allocation2 + $0x8] sm:$0xf] %v637
    %654 = vst [vmem:[#allocation2 + $0xc] sm:$0xf] %v638
    %655 = vst [vmem:[#allocation2 + $0x10] sm:$0xf] %v639
    %656 = vst [vmem:[#allocation2 + $0x14] sm:$0xf] %v640
    %657 = vst [vmem:[#allocation2 + $0x18] sm:$0xf] %v641
    %658 = vst [vmem:[#allocation2 + $0x1c] sm:$0xf] %v642
    %659 = vst [vmem:[#allocation2 + $0x20] sm:$0xf] %v643
    %660 = vst [vmem:[#allocation2 + $0x24] sm:$0xf] %v644
    %661 = vst [vmem:[#allocation2 + $0x28] sm:$0xf] %v645
    %662 = vst [vmem:[#allocation2 + $0x2c] sm:$0xf] %v646
    %663 = vst [vmem:[#allocation2 + $0x30] sm:$0xf] %v647
    %664 = vst [vmem:[#allocation2 + $0x34] sm:$0xf] %v648
    %665 = vst [vmem:[#allocation2 + $0x38] sm:$0xf] %v649
    %666 = vst [vmem:[#allocation2 + $0x3c] sm:$0xf] %v650
  $region33: #{mask_lm_forward.1} parent=0 // pred_fallthru
    _
  %v667 = vld [vmem:[#allocation2] sm:$0xf]
  %v668 = vld [vmem:[#allocation2 + $0x4] sm:$0xf]
  %v669 = vld [vmem:[#allocation2 + $0x8] sm:$0xf]
  %v670 = vld [vmem:[#allocation2 + $0xc] sm:$0xf]
  %v671 = vld [vmem:[#allocation2 + $0x10] sm:$0xf]
  %v672 = vld [vmem:[#allocation2 + $0x14] sm:$0xf]
  %v673 = vld [vmem:[#allocation2 + $0x18] sm:$0xf]
  %v674 = vld [vmem:[#allocation2 + $0x1c] sm:$0xf]
  %v675 = vld [vmem:[#allocation2 + $0x20] sm:$0xf]
  %v676 = vld [vmem:[#allocation2 + $0x24] sm:$0xf]
  %v677 = vld [vmem:[#allocation2 + $0x28] sm:$0xf]
  %v678 = vld [vmem:[#allocation2 + $0x2c] sm:$0xf]
  %v679 = vld [vmem:[#allocation2 + $0x30] sm:$0xf]
  %v680 = vld [vmem:[#allocation2 + $0x34] sm:$0xf]
  %v681 = vld [vmem:[#allocation2 + $0x38] sm:$0xf]
  %v682 = vld [vmem:[#allocation2 + $0x3c] sm:$0xf]
  %v683 = vld [vmem:[%s5] sm:$0xff]
  %v684 = vld [vmem:[%s5 + $0x8] sm:$0xff]
  %v685 = vld [vmem:[%s5 + $0x10] sm:$0xff]
  %v686 = vld [vmem:[%s5 + $0x18] sm:$0xff]
  %v687 = vld [vmem:[%s5 + $0x20] sm:$0xff]
  %v688 = vld [vmem:[%s5 + $0x28] sm:$0xff]
  %v689 = vld [vmem:[%s5 + $0x30] sm:$0xff]
  %v690 = vld [vmem:[%s5 + $0x38] sm:$0xff]
  %v691 = vld [vmem:[%s5 + $0x40] sm:$0xff]
  %v692 = vld [vmem:[%s5 + $0x48] sm:$0xff]
  %v693 = vld [vmem:[%s5 + $0x50] sm:$0xff]
  %v694 = vld [vmem:[%s5 + $0x58] sm:$0xff]
  %v695 = vld [vmem:[%s5 + $0x60] sm:$0xff]
  %v696 = vld [vmem:[%s5 + $0x68] sm:$0xff]
  %v697 = vld [vmem:[%s5 + $0x70] sm:$0xff]
  %v698 = vld [vmem:[%s5 + $0x78] sm:$0xff]
  %v699 = vld [vmem:[%s6] sm:$0x3]
  %v701 = vperm.slane %v699, 0
  %v702 = vperm.slane %v699, 1
  %v721 = vunpack.c.l.b16 %v667
  %v722 = vunpack.c.l.b16 %v668
  %v723 = vunpack.c.l.b16 %v669
  %v724 = vunpack.c.l.b16 %v670
  %v725 = vunpack.c.l.b16 %v671
  %v726 = vunpack.c.l.b16 %v672
  %v727 = vunpack.c.l.b16 %v673
  %v728 = vunpack.c.l.b16 %v674
  %v729 = vunpack.c.l.b16 %v675
  %v730 = vunpack.c.l.b16 %v676
  %v731 = vunpack.c.l.b16 %v677
  %v732 = vunpack.c.l.b16 %v678
  %v733 = vunpack.c.l.b16 %v679
  %v734 = vunpack.c.l.b16 %v680
  %v735 = vunpack.c.l.b16 %v681
  %v736 = vunpack.c.l.b16 %v682
  %v737 = vpack.c.b16 %v722, %v721
  %v738 = vpack.c.b16 %v724, %v723
  %v739 = vpack.c.b16 %v726, %v725
  %v740 = vpack.c.b16 %v728, %v727
  %v741 = vpack.c.b16 %v730, %v729
  %v742 = vpack.c.b16 %v732, %v731
  %v743 = vpack.c.b16 %v734, %v733
  %v744 = vpack.c.b16 %v736, %v735
  %v769 = vunpack.c.l.b16 %v683
  %v770 = vunpack.c.h.b16 %v683
  %v771 = vunpack.c.l.b16 %v684
  %v772 = vunpack.c.h.b16 %v684
  %v773 = vunpack.c.l.b16 %v685
  %v774 = vunpack.c.h.b16 %v685
  %v775 = vunpack.c.l.b16 %v686
  %v776 = vunpack.c.h.b16 %v686
  %v777 = vunpack.c.l.b16 %v687
  %v778 = vunpack.c.h.b16 %v687
  %v779 = vunpack.c.l.b16 %v688
  %v780 = vunpack.c.h.b16 %v688
  %v781 = vunpack.c.l.b16 %v689
  %v782 = vunpack.c.h.b16 %v689
  %v783 = vunpack.c.l.b16 %v690
  %v784 = vunpack.c.h.b16 %v690
  %v785 = vunpack.c.l.b16 %v691
  %v786 = vunpack.c.h.b16 %v691
  %v787 = vunpack.c.l.b16 %v692
  %v788 = vunpack.c.h.b16 %v692
  %v789 = vunpack.c.l.b16 %v693
  %v790 = vunpack.c.h.b16 %v693
  %v791 = vunpack.c.l.b16 %v694
  %v792 = vunpack.c.h.b16 %v694
  %v793 = vunpack.c.l.b16 %v695
  %v794 = vunpack.c.h.b16 %v695
  %v795 = vunpack.c.l.b16 %v696
  %v796 = vunpack.c.h.b16 %v696
  %v797 = vunpack.c.l.b16 %v697
  %v798 = vunpack.c.h.b16 %v697
  %v799 = vunpack.c.l.b16 %v698
  %v800 = vunpack.c.h.b16 %v698
  %v801 = vpack.c.b16 %v771, %v769
  %v802 = vpack.c.b16 %v772, %v770
  %v803 = vpack.c.b16 %v775, %v773
  %v804 = vpack.c.b16 %v776, %v774
  %v805 = vpack.c.b16 %v779, %v777
  %v806 = vpack.c.b16 %v780, %v778
  %v807 = vpack.c.b16 %v783, %v781
  %v808 = vpack.c.b16 %v784, %v782
  %v809 = vpack.c.b16 %v787, %v785
  %v810 = vpack.c.b16 %v788, %v786
  %v811 = vpack.c.b16 %v791, %v789
  %v812 = vpack.c.b16 %v792, %v790
  %v813 = vpack.c.b16 %v795, %v793
  %v814 = vpack.c.b16 %v796, %v794
  %v815 = vpack.c.b16 %v799, %v797
  %v816 = vpack.c.b16 %v800, %v798
  %833 = vmatpush.bf16.msra.mxu0 %v815
  %834 = vmatpush.bf16.msra.mxu0 %v813
  %835 = vmatpush.bf16.msra.mxu0 %v811
  %836 = vmatpush.bf16.msra.mxu0 %v809
  %837 = vmatpush.bf16.msra.mxu0 %v807
  %838 = vmatpush.bf16.msra.mxu0 %v805
  %839 = vmatpush.bf16.msra.mxu0 %v803
  %840 = vmatpush.bf16.msra.mxu0 %v801
  %841 = vmatmul.bf16.gmra.mxu0 %v737
  %v842 = vpop.f32.mrf.mxu0
  %v843 = vadd.f32 %v701, %v842
  %v844 = vpop.f32.mrf.mxu0
  %v845 = vadd.f32 %v701, %v844
  %846 = vmatmul.bf16.gmra.mxu0 %v738
  %v847 = vpop.f32.mrf.mxu0
  %v848 = vadd.f32 %v701, %v847
  %v849 = vpop.f32.mrf.mxu0
  %v850 = vadd.f32 %v701, %v849
  %851 = vmatmul.bf16.gmra.mxu0 %v739
  %v852 = vpop.f32.mrf.mxu0
  %v853 = vadd.f32 %v701, %v852
  %v854 = vpop.f32.mrf.mxu0
  %v855 = vadd.f32 %v701, %v854
  %856 = vmatmul.bf16.gmra.mxu0 %v740
  %v857 = vpop.f32.mrf.mxu0
  %v858 = vadd.f32 %v701, %v857
  %v859 = vpop.f32.mrf.mxu0
  %v860 = vadd.f32 %v701, %v859
  %861 = vmatmul.bf16.gmra.mxu0 %v741
  %v862 = vpop.f32.mrf.mxu0
  %v863 = vadd.f32 %v701, %v862
  %v864 = vpop.f32.mrf.mxu0
  %v865 = vadd.f32 %v701, %v864
  %866 = vmatmul.bf16.gmra.mxu0 %v742
  %v867 = vpop.f32.mrf.mxu0
  %v868 = vadd.f32 %v701, %v867
  %v869 = vpop.f32.mrf.mxu0
  %v870 = vadd.f32 %v701, %v869
  %871 = vmatmul.bf16.gmra.mxu0 %v743
  %v872 = vpop.f32.mrf.mxu0
  %v873 = vadd.f32 %v701, %v872
  %v874 = vpop.f32.mrf.mxu0
  %v875 = vadd.f32 %v701, %v874
  %876 = vmatmul.bf16.gmra.mxu0 %v744
  %v877 = vpop.f32.mrf.mxu0
  %v878 = vadd.f32 %v701, %v877
  %v879 = vpop.f32.mrf.mxu0
  %v880 = vadd.f32 %v701, %v879
  %881 = vdwg.mxu0
  %882 = vmatpush.bf16.msra.mxu0 %v816
  %883 = vmatpush.bf16.msra.mxu0 %v814
  %884 = vmatpush.bf16.msra.mxu0 %v812
  %885 = vmatpush.bf16.msra.mxu0 %v810
  %886 = vmatpush.bf16.msra.mxu0 %v808
  %887 = vmatpush.bf16.msra.mxu0 %v806
  %888 = vmatpush.bf16.msra.mxu0 %v804
  %889 = vmatpush.bf16.msra.mxu0 %v802
  %890 = vmatmul.bf16.gmra.mxu0 %v737
  %v891 = vpop.f32.mrf.mxu0
  %v892 = vadd.f32 %v702, %v891
  %v893 = vpop.f32.mrf.mxu0
  %v894 = vadd.f32 %v702, %v893
  %895 = vmatmul.bf16.gmra.mxu0 %v738
  %v896 = vpop.f32.mrf.mxu0
  %v897 = vadd.f32 %v702, %v896
  %v898 = vpop.f32.mrf.mxu0
  %v899 = vadd.f32 %v702, %v898
  %900 = vmatmul.bf16.gmra.mxu0 %v739
  %v901 = vpop.f32.mrf.mxu0
  %v902 = vadd.f32 %v702, %v901
  %v903 = vpop.f32.mrf.mxu0
  %v904 = vadd.f32 %v702, %v903
  %905 = vmatmul.bf16.gmra.mxu0 %v740
  %v906 = vpop.f32.mrf.mxu0
  %v907 = vadd.f32 %v702, %v906
  %v908 = vpop.f32.mrf.mxu0
  %v909 = vadd.f32 %v702, %v908
  %910 = vmatmul.bf16.gmra.mxu0 %v741
  %v911 = vpop.f32.mrf.mxu0
  %v912 = vadd.f32 %v702, %v911
  %v913 = vpop.f32.mrf.mxu0
  %v914 = vadd.f32 %v702, %v913
  %915 = vmatmul.bf16.gmra.mxu0 %v742
  %v916 = vpop.f32.mrf.mxu0
  %v917 = vadd.f32 %v702, %v916
  %v918 = vpop.f32.mrf.mxu0
  %v919 = vadd.f32 %v702, %v918
  %920 = vmatmul.bf16.gmra.mxu0 %v743
  %v921 = vpop.f32.mrf.mxu0
  %v922 = vadd.f32 %v702, %v921
  %v923 = vpop.f32.mrf.mxu0
  %v924 = vadd.f32 %v702, %v923
  %925 = vmatmul.bf16.gmra.mxu0 %v744
  %v926 = vpop.f32.mrf.mxu0
  %v927 = vadd.f32 %v702, %v926
  %v928 = vpop.f32.mrf.mxu0
  %v929 = vadd.f32 %v702, %v928
  %930 = vdwg.mxu0
  %931 = vst [vmem:[%s7] sm:$0xff] %v843
  %932 = vst [vmem:[%s7 + $0x8] sm:$0xff] %v892
  %933 = vst [vmem:[%s7 + $0x10] sm:$0xff] %v845
  %934 = vst [vmem:[%s7 + $0x18] sm:$0xff] %v894
  %935 = vst [vmem:[%s7 + $0x20] sm:$0xff] %v848
  %936 = vst [vmem:[%s7 + $0x28] sm:$0xff] %v897
  %937 = vst [vmem:[%s7 + $0x30] sm:$0xff] %v850
  %938 = vst [vmem:[%s7 + $0x38] sm:$0xff] %v899
  %939 = vst [vmem:[%s7 + $0x40] sm:$0xff] %v853
  %940 = vst [vmem:[%s7 + $0x48] sm:$0xff] %v902
  %941 = vst [vmem:[%s7 + $0x50] sm:$0xff] %v855
  %942 = vst [vmem:[%s7 + $0x58] sm:$0xff] %v904
  %943 = vst [vmem:[%s7 + $0x60] sm:$0xff] %v858
  %944 = vst [vmem:[%s7 + $0x68] sm:$0xff] %v907
  %945 = vst [vmem:[%s7 + $0x70] sm:$0xff] %v860
  %946 = vst [vmem:[%s7 + $0x78] sm:$0xff] %v909
  %947 = vst [vmem:[%s7 + $0x80] sm:$0xff] %v863
  %948 = vst [vmem:[%s7 + $0x88] sm:$0xff] %v912
  %949 = vst [vmem:[%s7 + $0x90] sm:$0xff] %v865
  %950 = vst [vmem:[%s7 + $0x98] sm:$0xff] %v914
  %951 = vst [vmem:[%s7 + $0xa0] sm:$0xff] %v868
  %952 = vst [vmem:[%s7 + $0xa8] sm:$0xff] %v917
  %953 = vst [vmem:[%s7 + $0xb0] sm:$0xff] %v870
  %954 = vst [vmem:[%s7 + $0xb8] sm:$0xff] %v919
  %955 = vst [vmem:[%s7 + $0xc0] sm:$0xff] %v873
  %956 = vst [vmem:[%s7 + $0xc8] sm:$0xff] %v922
  %957 = vst [vmem:[%s7 + $0xd0] sm:$0xff] %v875
  %958 = vst [vmem:[%s7 + $0xd8] sm:$0xff] %v924
  %959 = vst [vmem:[%s7 + $0xe0] sm:$0xff] %v878
  %960 = vst [vmem:[%s7 + $0xe8] sm:$0xff] %v927
  %961 = vst [vmem:[%s7 + $0xf0] sm:$0xff] %v880
  %962 = vst [vmem:[%s7 + $0xf8] sm:$0xff] %v929
  // Predicated region
  $region34: #{mask_lm_forward.1} parent=0 // pred_check
    _
  $region35: #{mask_lm_forward.1} parent=0 // pred_check_branch
    %964 = sbr.rel (0) target = $region37
  $region36: #{mask_lm_forward.1} parent=0 // pred_region
    _
  $region37: #{mask_lm_forward.1} parent=0 // pred_fallthru
    _
  // Predicated region
  $region38: #{mask_lm_forward.1} parent=0 // pred_check
    _
  $region39: #{mask_lm_forward.1} parent=0 // pred_check_branch
    %966 = sbr.rel (0) target = $region41
  $region40: #{mask_lm_forward.1} parent=0 // pred_region
    _
  $region41: #{mask_lm_forward.1} parent=0 // pred_fallthru
    _

</llo_original>
